<compile_context>
chip_gen: v7x
topology: tpu7x:2x2x1
jax: 0.10.0
libtpu: 0.0.40
codegen_flags: <defaults>
</compile_context>

<pallas_src>
import functools

import jax
import jax.numpy as jnp
from jax.experimental import pallas as pl
from jax.experimental.pallas import tpu as pltpu


def _ce_weight_kernel(logits_ref, targets_ref, wt_ref, numer_ref, denom_ref, *,
                      n_total, block_n):
    i = pl.program_id(0)

    x = logits_ref[...].astype(jnp.float32)      # (TN, C)
    t = targets_ref[...]                         # (TN, 1) int32
    w_t = wt_ref[...].astype(jnp.float32)        # (TN, 1) f32 (gathered in wrapper)

    tn, c = x.shape

    # Numerically stable log-sum-exp along the class axis.
    m = jnp.max(x, axis=1, keepdims=True)                              # (TN, 1)
    lse = jnp.log(jnp.sum(jnp.exp(x - m), axis=1, keepdims=True))      # (TN, 1)

    # Gather the target logit straight from x via iota-compare select
    # (no full logp array, no float one-hot matmul, and `x - m` is consumed
    # only by the exp/LSE chain above).
    col = jax.lax.broadcasted_iota(jnp.int32, (tn, c), 1)
    x_t = jnp.sum(jnp.where(col == t, x, 0.0), axis=1, keepdims=True)  # (TN, 1)
    lp_t = (x_t - m) - lse                      # log_softmax at the target class

    # Mask rows of a padded final tile (N % TN != 0): padded rows contribute 0.
    # jnp.where selects (not arithmetic masking) so NaN/Inf garbage cannot leak.
    row = jax.lax.broadcasted_iota(jnp.int32, (tn, 1), 0) + i * block_n
    valid = row < n_total

    numer_ref[...] = jnp.sum(jnp.where(valid, -w_t * lp_t, 0.0)).reshape(1, 1, 1)
    denom_ref[...] = jnp.sum(jnp.where(valid, w_t, 0.0)).reshape(1, 1, 1)


def cross_entropy_loss_weight(outputs, targets, weight, *, block_n=None):
    """outputs: (N, C) float, targets: (N,) int, weight: (C,) float -> scalar f32."""
    n, c = outputs.shape
    itemsize = jnp.dtype(outputs.dtype).itemsize

    targets2d = targets.reshape(n, 1).astype(jnp.int32)
    # Per-row class weight gathered once in the wrapper: removes a full (TN, C)
    # select plus a cross-lane reduction per tile for 4 extra bytes/row of HBM.
    w_t = weight.astype(jnp.float32)[targets.astype(jnp.int32)].reshape(n, 1)

    try:
        kind = jax.devices()[0].device_kind.lower()
    except Exception:  # pragma: no cover - defensive
        kind = ""

    c_padded = pl.cdiv(c, 128) * 128            # lane padding of the VMEM tile

    if block_n is None:
        # Generation-aware tile-byte budget per logits buffer (f32 working set).
        if "v7" in kind:
            budget = 8 << 20                    # 3.2 TB/s HBM: big tiles amortize step cost
        elif "v5" in kind:
            budget = 2 << 20                    # 16 MiB scoped default, slower HBM
        else:                                   # v6e / unknown
            budget = 4 << 20
        bn = budget // (c_padded * 4)           # sized against the f32 working set
        block_n = max(8, (int(bn) // 8) * 8)

    if block_n >= n or n < 8:
        block_n = n                             # single full-height tile
    else:
        block_n = max(8, (block_n // 8) * 8)

    num_tiles = pl.cdiv(n, block_n)

    # Explicit VMEM limit: double-buffered logits block + f32 temporaries.
    block_bytes = block_n * c_padded * itemsize
    temps_bytes = 3 * block_n * c_padded * 4
    vmem_limit = 2 * block_bytes + temps_bytes + (4 << 20)
    vmem_limit = max(vmem_limit, 32 << 20)
    vmem_limit = min(vmem_limit, (48 << 20) if "v7" in kind else (96 << 20))

    kernel = functools.partial(_ce_weight_kernel, n_total=n, block_n=block_n)

    cost = pl.CostEstimate(
        flops=6 * n * c,
        transcendentals=n * c,
        bytes_accessed=n * c * itemsize + 2 * n * 4 + num_tiles * 8,
    )

    numer, denom = pl.pallas_call(
        kernel,
        out_shape=(
            jax.ShapeDtypeStruct((num_tiles, 1, 1), jnp.float32),
            jax.ShapeDtypeStruct((num_tiles, 1, 1), jnp.float32),
        ),
        grid=(num_tiles,),
        in_specs=[
            pl.BlockSpec((block_n, c), lambda i: (i, 0)),   # logits tile
            pl.BlockSpec((block_n, 1), lambda i: (i, 0)),   # targets tile
            pl.BlockSpec((block_n, 1), lambda i: (i, 0)),   # per-row weight w[t_n]
        ],
        out_specs=(
            pl.BlockSpec((1, 1, 1), lambda i: (i, 0, 0)),   # partial numerator
            pl.BlockSpec((1, 1, 1), lambda i: (i, 0, 0)),   # partial denominator
        ),
        compiler_params=pltpu.CompilerParams(
            # Independent per-tile partials -> N axis shards across TCs on v7x.
            dimension_semantics=("parallel",),
            vmem_limit_bytes=int(vmem_limit),
        ),
        cost_estimate=cost,
    )(outputs, targets2d, w_t)

    return jnp.sum(numer) / jnp.sum(denom)


def _reference(outputs, targets, weight):
    x = outputs.astype(jnp.float32)
    logp = jax.nn.log_softmax(x, axis=1)
    lp_t = jnp.take_along_axis(logp, targets[:, None].astype(jnp.int32), axis=1)[:, 0]
    w_t = weight[targets]
    return jnp.sum(-w_t * lp_t) / jnp.sum(w_t)


if __name__ == "__main__":
    key = jax.random.PRNGKey(0)
    k1, k2, k3, k4 = jax.random.split(key, 4)

    # Case 1: tiny single-tile problem (matches the module's 2-D CE usage).
    N1, C1 = 8, 32
    out1 = jax.random.normal(k1, (N1, C1), dtype=jnp.float32)
    tgt1 = jax.random.randint(k2, (N1,), 0, C1, dtype=jnp.int32)
    w1 = 0.5 + jnp.arange(C1, dtype=jnp.float32) / C1
    loss1 = jax.block_until_ready(cross_entropy_loss_weight(out1, tgt1, w1))
    ref1 = _reference(out1, tgt1, w1)
    assert jnp.allclose(loss1, ref1, atol=1e-5, rtol=1e-5), (loss1, ref1)

    # Case 2: multi-tile grid with a partial last tile (exercises the per-tile
    # partials, the wrapper reduction and the row-masking path).
    N2, C2 = 20, 128
    out2 = jax.random.normal(k3, (N2, C2), dtype=jnp.float32)
    tgt2 = jax.random.randint(k4, (N2,), 0, C2, dtype=jnp.int32)
    w2 = 0.25 + (jnp.arange(C2, dtype=jnp.float32) % 7) / 7.0
    loss2 = jax.block_until_ready(
        cross_entropy_loss_weight(out2, tgt2, w2, block_n=8))
    ref2 = _reference(out2, tgt2, w2)
    assert jnp.allclose(loss2, ref2, atol=1e-5, rtol=1e-5), (loss2, ref2)

    print("KERNEL_OK")
</pallas_src>

<mosaic_0001>
module attributes {stable_mosaic.version = 11 : i64} {
  func.func @_ce_weight_kernel(%arg0: i32, %arg1: memref<8x32xf32, #tpu.memory_space<vmem>>, %arg2: memref<8x1xi32, #tpu.memory_space<vmem>>, %arg3: memref<8x1xf32, #tpu.memory_space<vmem>>, %arg4: memref<1x1x1xf32, #tpu.memory_space<vmem>>, %arg5: memref<1x1x1xf32, #tpu.memory_space<vmem>>) attributes {dimension_semantics = [#tpu.dimension_semantics<parallel>], iteration_bounds = array<i64: 1>, scalar_prefetch = 0 : i64, scratch_operands = 0 : i64, tpu.core_type = #tpu.core_type<tc>, window_params = [{transform_indices = @transform_0, window_bounds = array<i64: 8, 32>}, {transform_indices = @transform_1, window_bounds = array<i64: 8, 1>}, {transform_indices = @transform_2, window_bounds = array<i64: 8, 1>}, {transform_indices = @transform_3, window_bounds = array<i64: 1, 1, 1>}, {transform_indices = @transform_4, window_bounds = array<i64: 1, 1, 1>}]} {
    %c0 = arith.constant 0 : index
    %c0_0 = arith.constant 0 : index
    %0 = vector.load %arg1[%c0, %c0_0] : memref<8x32xf32, #tpu.memory_space<vmem>>, vector<8x32xf32>
    %c0_1 = arith.constant 0 : index
    %c0_2 = arith.constant 0 : index
    %1 = vector.load %arg2[%c0_1, %c0_2] : memref<8x1xi32, #tpu.memory_space<vmem>>, vector<8x1xi32>
    %c0_3 = arith.constant 0 : index
    %c0_4 = arith.constant 0 : index
    %2 = vector.load %arg3[%c0_3, %c0_4] : memref<8x1xf32, #tpu.memory_space<vmem>>, vector<8x1xf32>
    %cst = arith.constant dense<0xFF800000> : vector<8xf32>
    %3 = vector.multi_reduction <maximumf>, %0, %cst [1] : vector<8x32xf32> to vector<8xf32>
    %4 = vector.shape_cast %3 : vector<8xf32> to vector<8x1xf32>
    %5 = vector.broadcast %4 : vector<8x1xf32> to vector<8x32xf32>
    %6 = arith.subf %0, %5 : vector<8x32xf32>
    %7 = math.exp %6 : vector<8x32xf32>
    %cst_5 = arith.constant dense<0.000000e+00> : vector<8xf32>
    %8 = vector.multi_reduction <add>, %7, %cst_5 [1] : vector<8x32xf32> to vector<8xf32>
    %9 = vector.shape_cast %8 : vector<8xf32> to vector<8x1xf32>
    %10 = math.log %9 : vector<8x1xf32>
    %11 = tpu.iota {dimensions = array<i32: 1>} : vector<8x32xi32>
    %12 = vector.broadcast %1 : vector<8x1xi32> to vector<8x32xi32>
    %13 = arith.cmpi eq, %11, %12 : vector<8x32xi32>
    %cst_6 = arith.constant 0.000000e+00 : f32
    %14 = vector.broadcast %cst_6 : f32 to vector<8x32xf32>
    %15 = arith.select %13, %0, %14 : vector<8x32xi1>, vector<8x32xf32>
    %cst_7 = arith.constant dense<0.000000e+00> : vector<8xf32>
    %16 = vector.multi_reduction <add>, %15, %cst_7 [1] : vector<8x32xf32> to vector<8xf32>
    %17 = vector.shape_cast %16 : vector<8xf32> to vector<8x1xf32>
    %18 = arith.subf %17, %4 : vector<8x1xf32>
    %19 = arith.subf %18, %10 : vector<8x1xf32>
    %20 = tpu.iota {dimensions = array<i32: 0>} : vector<8x1xi32>
    %c8_i32 = arith.constant 8 : i32
    %21 = arith.muli %arg0, %c8_i32 : i32
    %22 = vector.broadcast %21 : i32 to vector<8x1xi32>
    %23 = arith.addi %20, %22 : vector<8x1xi32>
    %c8_i32_8 = arith.constant 8 : i32
    %24 = vector.broadcast %c8_i32_8 : i32 to vector<8x1xi32>
    %25 = arith.cmpi slt, %23, %24 : vector<8x1xi32>
    %cst_9 = arith.constant 0.000000e+00 : f32
    %26 = vector.broadcast %cst_9 : f32 to vector<8x1xf32>
    %27 = arith.subf %26, %2 : vector<8x1xf32>
    %28 = arith.mulf %27, %19 : vector<8x1xf32>
    %cst_10 = arith.constant 0.000000e+00 : f32
    %29 = vector.broadcast %cst_10 : f32 to vector<8x1xf32>
    %30 = arith.select %25, %28, %29 : vector<8x1xi1>, vector<8x1xf32>
    %31 = vector.shape_cast %30 : vector<8x1xf32> to vector<1x8x1xf32>
    %cst_11 = arith.constant dense<0.000000e+00> : vector<1xf32>
    %32 = vector.multi_reduction <add>, %31, %cst_11 [1, 2] : vector<1x8x1xf32> to vector<1xf32>
    %33 = vector.shape_cast %32 : vector<1xf32> to vector<1x1x1xf32>
    %34 = vector.extract %33[0, 0, 0] : f32 from vector<1x1x1xf32>
    %35 = vector.broadcast %34 : f32 to vector<1x1x1xf32>
    %c0_12 = arith.constant 0 : index
    %c0_13 = arith.constant 0 : index
    %c0_14 = arith.constant 0 : index
    %36 = vector.load %arg4[%c0_12, %c0_13, %c0_14] : memref<1x1x1xf32, #tpu.memory_space<vmem>>, vector<1x1x1xf32>
    tpu.vector_store %arg4[%c0_12, %c0_13, %c0_14], %35 {strides = array<i32>} : memref<1x1x1xf32, #tpu.memory_space<vmem>>, vector<1x1x1xf32>,
    %cst_15 = arith.constant 0.000000e+00 : f32
    %37 = vector.broadcast %cst_15 : f32 to vector<8x1xf32>
    %38 = arith.select %25, %2, %37 : vector<8x1xi1>, vector<8x1xf32>
    %39 = vector.shape_cast %38 : vector<8x1xf32> to vector<1x8x1xf32>
    %cst_16 = arith.constant dense<0.000000e+00> : vector<1xf32>
    %40 = vector.multi_reduction <add>, %39, %cst_16 [1, 2] : vector<1x8x1xf32> to vector<1xf32>
    %41 = vector.shape_cast %40 : vector<1xf32> to vector<1x1x1xf32>
    %42 = vector.extract %41[0, 0, 0] : f32 from vector<1x1x1xf32>
    %43 = vector.broadcast %42 : f32 to vector<1x1x1xf32>
    %c0_17 = arith.constant 0 : index
    %c0_18 = arith.constant 0 : index
    %c0_19 = arith.constant 0 : index
    %44 = vector.load %arg5[%c0_17, %c0_18, %c0_19] : memref<1x1x1xf32, #tpu.memory_space<vmem>>, vector<1x1x1xf32>
    tpu.vector_store %arg5[%c0_17, %c0_18, %c0_19], %43 {strides = array<i32>} : memref<1x1x1xf32, #tpu.memory_space<vmem>>, vector<1x1x1xf32>,
    return
  }
  func.func @transform_0(%arg0: i32) -> (i32, i32) {
    %c0_i32 = arith.constant 0 : i32
    %c0_i32_0 = arith.constant 0 : i32
    return %arg0, %c0_i32 : i32, i32
  }
  func.func @transform_1(%arg0: i32) -> (i32, i32) {
    %c0_i32 = arith.constant 0 : i32
    %c0_i32_0 = arith.constant 0 : i32
    return %arg0, %c0_i32 : i32, i32
  }
  func.func @transform_2(%arg0: i32) -> (i32, i32) {
    %c0_i32 = arith.constant 0 : i32
    %c0_i32_0 = arith.constant 0 : i32
    return %arg0, %c0_i32 : i32, i32
  }
  func.func @transform_3(%arg0: i32) -> (i32, i32, i32) {
    %c0_i32 = arith.constant 0 : i32
    %c0_i32_0 = arith.constant 0 : i32
    %c0_i32_1 = arith.constant 0 : i32
    return %arg0, %c0_i32, %c0_i32_0 : i32, i32, i32
  }
  func.func @transform_4(%arg0: i32) -> (i32, i32, i32) {
    %c0_i32 = arith.constant 0 : i32
    %c0_i32_0 = arith.constant 0 : i32
    %c0_i32_1 = arith.constant 0 : i32
    return %arg0, %c0_i32, %c0_i32_0 : i32, i32, i32
  }
}

</mosaic_0001>

<llo_original>
// kernel: tpu_custom_call.1
$region0: #{tpu_custom_call.1}
  #allocation0 [shape = 'u32[]', space=smem, size = 0x4, offset = 0x4, fixed_abs, tag = 'smem constant byte address 0x4 - core index']
  #allocation1 [shape = 'u32[144,128]{1,0:T(1,128)}', space=vmem, size = 0x12000, scoped, tag = 'internal scratch']
  %s0 = inlined_call_operand.vmem [shape: f32[8,32], index: 0, kind: input, shape index: {}]
  %s1 = inlined_call_operand.vmem [shape: s32[8,1], index: 1, kind: input, shape index: {}]
  %s2 = inlined_call_operand.vmem [shape: f32[8,1], index: 2, kind: input, shape index: {}]
  %s3 = inlined_call_operand.hbm [shape: f32[1,1,1], index: 3, kind: output, shape index: {0}]
  %s4 = inlined_call_operand.hbm [shape: f32[1,1,1], index: 4, kind: output, shape index: {1}]
  %5 = xla_tuple %s3, %s4
  %s6 = sld [smem:[#allocation0]]
  $region30: #{tpu_custom_call.1} parent=0
    _
  %s8 = ssub.s32 1, %s6
  %s9 = scalar_select 0, %s8, %s6
  $region1: #{tpu_custom_call.1} parent=0
    #allocation2 [shape = 'u8[512]{0}', space=vmem, size = 0x400, scoped, tag = 'output window, operand 0, single buffered']
    #allocation3 [shape = 's32[1]{0}', space=sflag, size = 0x4, scoped, tag = 'scoped memory for tpu_custom_call.1']
    #allocation4 [shape = 'u8[512]{0}', space=vmem, size = 0x400, scoped, tag = 'output window, operand 1, single buffered']
    #allocation5 [shape = 's32[1]{0}', space=sflag, size = 0x4, scoped, tag = 'scoped memory for tpu_custom_call.1']
    %10 = vsyncpa [#allocation3], 0
    %11 = vsyncpa [#allocation5], 0
    // Predicated region
    $region2: #{tpu_custom_call.1} parent=1 // pred_check
      _
    $region3: #{tpu_custom_call.1} parent=1 // pred_check_branch
      %13 = sbr.rel (0) target = $region5
    $region4: #{tpu_custom_call.1} parent=1 // pred_region
      _
    $region5: #{tpu_custom_call.1} parent=1 // pred_fallthru
      _
    // Predicated region
    $region6: #{tpu_custom_call.1} parent=1 // pred_check
      _
    $region7: #{tpu_custom_call.1} parent=1 // pred_check_branch
      %15 = sbr.rel (0) target = $region9
    $region8: #{tpu_custom_call.1} parent=1 // pred_region
      _
    $region9: #{tpu_custom_call.1} parent=1 // pred_fallthru
      _
    // Predicated region
    $region10: #{tpu_custom_call.1} parent=1 // pred_check
      _
    $region11: #{tpu_custom_call.1} parent=1 // pred_check_branch
      %17 = sbr.rel (0) target = $region13
    $region12: #{tpu_custom_call.1} parent=1 // pred_region
      _
    $region13: #{tpu_custom_call.1} parent=1 // pred_fallthru
      _
    %v18 = vld [vmem:[%s0] sm:$0xff]
    %v19 = vld [vmem:[%s1] sm:$0xff]
    %v20 = vld [vmem:[%s2] sm:$0xff]
    %vm21 = vcmask 261120
    %v22 = vsel %vm21, %v18, -inf
    %23 = vmax.xlane.f32.xlu0 %v22
    %v24 = vpop.xlane.xlu0 %23
    %v25 = vsub.f32 %v18, %v24
    %v26 = vmul.f32 %v25, 1.442695
    %v27 = vpow.pop %v26
    %v28 = vsel %vm21, %v27, 0.0
    %29 = vadd.xlane.f32.xlu0 %v28
    %v30 = vpop.xlane.xlu0 %29
    %v31 = vlog2.pop %v30
    %v32 = vmul.f32 %v31, 0.6931472
    %v33 = vlaneseq
    %v34 = vand.u32 %v33, 127
    %35 = vset.pattern.permute.xlu0 0
    %36 = vperm.xlu0 %35, %v19
    %v37 = vpop.permute.xlu0 %36
    %vm38 = vcmp.eq.s32.totalorder %v34, %v37
    %v39 = vsel %vm38, %v18, 0.0
    %v40 = vsel %vm21, %v39, 0.0
    %41 = vadd.xlane.f32.xlu0 %v40
    %v42 = vpop.xlane.xlu0 %41
    %v43 = vsub.f32 %v42, %v24
    %v44 = vsub.f32 %v43, %v32
    %v45 = vlaneseq
    %v46 = vshrl.u32 %v45, 7
    %s47 = smul.u32 0, 8
    %v48 = vstv %s47
    %v49 = vadd.s32 %v46, %v48
    %vm50 = vcmp.lt.s32.totalorder %v49, 8
    %v51 = vsub.f32 0.0, %v20
    %v52 = vmul.f32 %v51, %v44
    %v53 = vsel %vm50, %v52, 0.0
    %vm54 = vcmask 7168
    %v55 = vsel %vm54, %v53, 0.0
    %56 = vadd.xlane.f32.xlu0 %v55
    %v57 = vpop.xlane.xlu0 %56
    %v58 = vrot.slane %v57, 4
    %v59 = vadd.f32 %v57, %v58
    %v60 = vrot.slane %v59, 2
    %v61 = vadd.f32 %v59, %v60
    %v62 = vrot.slane %v61, 1
    %v63 = vadd.f32 %v61, %v62
    %s64 = vtos %v63
    %v65 = vstv %s64
    %vm66 = vcmask 0
    %67 = vst.msk [vmem:[#allocation2] sm:$0x1] %vm66, %v65
    %v68 = vsel %vm50, %v20, 0.0
    %v69 = vsel %vm54, %v68, 0.0
    %70 = vadd.xlane.f32.xlu0 %v69
    %v71 = vpop.xlane.xlu0 %70
    %v72 = vrot.slane %v71, 4
    %v73 = vadd.f32 %v71, %v72
    %v74 = vrot.slane %v73, 2
    %v75 = vadd.f32 %v73, %v74
    %v76 = vrot.slane %v75, 1
    %v77 = vadd.f32 %v75, %v76
    %s78 = vtos %v77
    %v79 = vstv %s78
    %80 = vst.msk [vmem:[#allocation4] sm:$0x1] %vm66, %v79
    // Predicated region
    $region14: #{tpu_custom_call.1} parent=1 // pred_check
      _
    $region15: #{tpu_custom_call.1} parent=1 // pred_check_branch
      %82 = sbr.rel (0) target = $region17
    $region16: #{tpu_custom_call.1} parent=1 // pred_region
      %s84 = ssub.s32 16, 16
      %85 = vsyncadd [#allocation3], %s84
      %s87 = sshll.u32 [#allocation2], 4
      %s88 = int_to_ptr.vmem [resolvable:$true] %s87
      %90 = dma.vmem_to_hbm [thread:$0]  %s88, 16, %s3, [#allocation3]
    $region17: #{tpu_custom_call.1} parent=1 // pred_fallthru
      _
    // Predicated region
    $region18: #{tpu_custom_call.1} parent=1 // pred_check
      _
    $region19: #{tpu_custom_call.1} parent=1 // pred_check_branch
      %92 = sbr.rel (0) target = $region21
    $region20: #{tpu_custom_call.1} parent=1 // pred_region
      %s94 = ssub.s32 16, 16
      %95 = vsyncadd [#allocation5], %s94
      %s97 = sshll.u32 [#allocation4], 4
      %s98 = int_to_ptr.vmem [resolvable:$true] %s97
      %100 = dma.vmem_to_hbm [thread:$0]  %s98, 16, %s4, [#allocation5]
    $region21: #{tpu_custom_call.1} parent=1 // pred_fallthru
      _
    // Predicated region
    $region22: #{tpu_custom_call.1} parent=1 // pred_check
      _
    $region23: #{tpu_custom_call.1} parent=1 // pred_check_branch
      %102 = sbr.rel (0) target = $region25
    $region24: #{tpu_custom_call.1} parent=1 // pred_region
      %103 = dma.done [#allocation3], 16
    $region25: #{tpu_custom_call.1} parent=1 // pred_fallthru
      _
    // Predicated region
    $region26: #{tpu_custom_call.1} parent=1 // pred_check
      _
    $region27: #{tpu_custom_call.1} parent=1 // pred_check_branch
      %105 = sbr.rel (0) target = $region29
    $region28: #{tpu_custom_call.1} parent=1 // pred_region
      %106 = dma.done [#allocation5], 16
    $region29: #{tpu_custom_call.1} parent=1 // pred_fallthru
      _
    %107 = vsyncpa [#allocation3], 1
    %108 = vsyncpa [#allocation5], 1

</llo_original>
